<compile_context>
chip_gen: v5e
topology: v5e:2x2
jax: 0.10.0
libtpu: 0.0.40
codegen_flags: <defaults>
</compile_context>

<pallas_src>
import jax
import jax.numpy as jnp
from jax import lax
from jax.experimental import pallas as pl
from jax.experimental.pallas import tpu as pltpu


def swapnet_b_kernel(x_ref, w_ref, o_ref):
    # x_ref: (tb, K)  flattened input tile (lane-dense on K)
    # w_ref: (N, K)   pre-composed weight, torch layout (lane-dense on K)
    # o_ref: (N, tb)  TRANSPOSED output tile: batch on the 128-lane axis
    x = x_ref[...].astype(w_ref.dtype)          # in-kernel cast (free, under DMA)
    out = lax.dot_general(
        w_ref[...], x,
        dimension_numbers=(((1,), (1,)), ((), ())),   # Wc @ x^T, no transpose op
        preferred_element_type=jnp.float32)
    o_ref[...] = out.astype(o_ref.dtype)


def prepare_weights(w1, w2, *, compute_dtype=jnp.float32):
    """One-time (init-time) weight prep: compose fc1 o fc into one matrix.

    w1: (N, K) = fc.weight,  w2: (N, N) = fc1.weight  (torch Linear layouts).
    Returns Wc = W2 @ W1 with shape (N, K).  NOTE: pre-composition (and the
    optional bf16 cast) is numerically close but not bit-identical to the
    original two-step f32 forward.
    """
    wc = jnp.dot(w2, w1, preferred_element_type=jnp.float32)
    return wc.astype(compute_dtype)


def swapnet_b_forward(x_nchw, w_combined, *, block_b=512):
    """x_nchw: (B, C, H, W); w_combined: (N, K) from prepare_weights().

    Returns (B, N) float32, matching the PyTorch module's output layout.
    """
    B = x_nchw.shape[0]
    x = x_nchw.reshape(B, -1)                  # same as torch .view(B, -1)
    K = x.shape[1]
    N, Kw = w_combined.shape
    assert Kw == K
    # block_b: multiple of 256 preferred (v6e/v7x MXU); at least a multiple
    # of 8 (f32) / 16 (bf16 x) for clean sublane packing of the x tile.

    out_nb_shape = jax.ShapeDtypeStruct((N, B), jnp.float32)   # lane-dense on B

    if B <= block_b:
        # Tiny batch: no grid loop; full arrays resident in VMEM.
        out_nb = pl.pallas_call(
            swapnet_b_kernel,
            out_shape=out_nb_shape,
            in_specs=[pl.BlockSpec(memory_space=pltpu.MemorySpace.VMEM),
                      pl.BlockSpec(memory_space=pltpu.MemorySpace.VMEM)],
            out_specs=pl.BlockSpec(memory_space=pltpu.MemorySpace.VMEM),
        )(x, w_combined)
        return out_nb.T

    # Batch-tiled path: x/out DMAs pipeline against MXU compute; weight block
    # is grid-invariant; batch axis "parallel" so v7x's two TCs split it.
    num_tiles = pl.cdiv(B, block_b)            # on v7x prefer an even count >= 2

    x_item = jnp.dtype(x.dtype).itemsize
    w_item = jnp.dtype(w_combined.dtype).itemsize
    # VMEM working set: 3-deep-buffered x tile + double-buffered out tile +
    # (double-buffered) grid-invariant weight.
    vmem_needed = (3 * block_b * K * x_item
                   + 2 * N * block_b * 4
                   + 2 * N * K * w_item)
    cp_kwargs = dict(dimension_semantics=("parallel",))
    if vmem_needed > 12 * 1024 * 1024:
        # Above v5e's conservative scoped default; request more, but never
        # more than ~48 MiB so it still fits v7x's 64 MiB physical VMEM.
        cp_kwargs["vmem_limit_bytes"] = min(int(vmem_needed * 3 // 2),
                                            48 * 1024 * 1024)

    cost = pl.CostEstimate(
        flops=2 * B * K * N,
        transcendentals=0,
        bytes_accessed=B * K * x_item + N * K * w_item + B * N * 4)

    out_nb = pl.pallas_call(
        swapnet_b_kernel,
        out_shape=out_nb_shape,
        grid=(num_tiles,),
        in_specs=[pl.BlockSpec((block_b, K), lambda i: (i, 0),
                               pipeline_mode=pl.Buffered(3)),   # hide DMA issue latency
                  pl.BlockSpec((N, K), lambda i: (0, 0))],
        out_specs=pl.BlockSpec((N, block_b), lambda i: (0, i)),
        compiler_params=pltpu.CompilerParams(**cp_kwargs),
        cost_estimate=cost,
    )(x, w_combined)
    return out_nb.T


if __name__ == "__main__":
    # Shapes implied by the module: forward flattens (B, C, H, W) -> (B, C*H*W),
    # so in_features of fc equals C*H*W.
    B, C, Hs, Ws = 2, 4, 16, 16
    in_channels = C * Hs * Ws          # 1024
    out_channels = 32

    key = jax.random.PRNGKey(0)
    kx, k1, k2, kx2, kx3 = jax.random.split(key, 5)

    x = jax.random.normal(kx, (B, C, Hs, Ws), dtype=jnp.float32)

    # Deterministic init mimicking nn.Linear default: U(-1/sqrt(fan_in), ...)
    bound1 = 1.0 / (in_channels ** 0.5)
    bound2 = 1.0 / (out_channels ** 0.5)
    w1 = jax.random.uniform(k1, (out_channels, in_channels), jnp.float32,
                            minval=-bound1, maxval=bound1)   # fc.weight
    w2 = jax.random.uniform(k2, (out_channels, out_channels), jnp.float32,
                            minval=-bound2, maxval=bound2)   # fc1.weight

    # Pure-JAX reference of the original two-layer forward.
    ref = (x.reshape(B, -1) @ w1.T) @ w2.T

    # --- f32 path (pre-composed weights, gridless small-batch kernel) ---
    wc_f32 = prepare_weights(w1, w2, compute_dtype=jnp.float32)
    out_f32 = jax.block_until_ready(swapnet_b_forward(x, wc_f32))
    assert out_f32.shape == (B, out_channels)
    assert jnp.allclose(out_f32, ref, atol=1e-4, rtol=1e-4)

    # --- bf16-weight path (x stays f32 in HBM; cast happens inside kernel) ---
    wc_bf16 = prepare_weights(w1, w2, compute_dtype=jnp.bfloat16)
    out_bf16 = jax.block_until_ready(swapnet_b_forward(x, wc_bf16))
    assert jnp.allclose(out_bf16, ref, atol=2e-2, rtol=2e-2)   # expected bf16 loss

    # --- batch-tiled / megacore-parallel path (even 2-step grid, block_b=512) ---
    B2 = 1024
    x2 = jax.random.normal(kx2, (B2, C, Hs, Ws), dtype=jnp.float32)
    ref2 = (x2.reshape(B2, -1) @ w1.T) @ w2.T
    out2 = jax.block_until_ready(swapnet_b_forward(x2, wc_f32, block_b=512))
    assert out2.shape == (B2, out_channels)
    assert jnp.allclose(out2, ref2, atol=1e-4, rtol=1e-4)

    # --- ragged tail (B not a multiple of block_b) ---
    B3 = 1093
    x3 = jax.random.normal(kx3, (B3, C, Hs, Ws), dtype=jnp.float32)
    ref3 = (x3.reshape(B3, -1) @ w1.T) @ w2.T
    out3 = jax.block_until_ready(swapnet_b_forward(x3, wc_f32, block_b=512))
    assert out3.shape == (B3, out_channels)
    assert jnp.allclose(out3, ref3, atol=1e-4, rtol=1e-4)

    print("KERNEL_OK")
</pallas_src>

<mosaic_0001>
module attributes {stable_mosaic.version = 11 : i64} {
  func.func @swapnet_b_kernel(%arg0: memref<2x1024xf32, #tpu.memory_space<vmem>>, %arg1: memref<32x1024xf32, #tpu.memory_space<vmem>>, %arg2: memref<32x2xf32, #tpu.memory_space<vmem>>) attributes {dimension_semantics = [], scalar_prefetch = 0 : i64, scratch_operands = 0 : i64, tpu.core_type = #tpu.core_type<tc>} {
    %c0 = arith.constant 0 : index
    %c0_0 = arith.constant 0 : index
    %0 = vector.load %arg0[%c0, %c0_0] : memref<2x1024xf32, #tpu.memory_space<vmem>>, vector<2x1024xf32>
    %c0_1 = arith.constant 0 : index
    %c0_2 = arith.constant 0 : index
    %1 = vector.load %arg1[%c0_1, %c0_2] : memref<32x1024xf32, #tpu.memory_space<vmem>>, vector<32x1024xf32>
    %cst = arith.constant dense<0.000000e+00> : vector<32x2xf32>
    %2 = tpu.matmul %1, %0, %cst {dimension_numbers = #tpu.dot_dimension_numbers<[1], [1], [0], [0], [0, 0, 1, 0], [], []>} : vector<32x1024xf32>, vector<2x1024xf32>, vector<32x2xf32> -> vector<32x2xf32>
    %c0_3 = arith.constant 0 : index
    %c0_4 = arith.constant 0 : index
    %3 = vector.load %arg2[%c0_3, %c0_4] : memref<32x2xf32, #tpu.memory_space<vmem>>, vector<32x2xf32>
    tpu.vector_store %arg2[%c0_3, %c0_4], %2 {strides = array<i32>} : memref<32x2xf32, #tpu.memory_space<vmem>>, vector<32x2xf32>,
    return
  }
}

</mosaic_0001>

<llo_original>
// kernel: tpu_custom_call.1
$region0: #{tpu_custom_call.1}
  #allocation0 [shape = 'u32[]', space=smem, size = 0x4, offset = 0x4, fixed_abs, tag = 'smem constant byte address 0x4 - core index']
  #allocation1 [shape = 'u32[72,128]{1,0:T(1,128)}', space=vmem, size = 0x9000, scoped, tag = 'internal scratch']
  %s0 = inlined_call_operand.hbm [shape: f32[2,1024], index: 0, kind: input, shape index: {}]
  %s1 = inlined_call_operand.hbm [shape: f32[32,1024], index: 1, kind: input, shape index: {}]
  %s2 = inlined_call_operand.vmem [shape: f32[32,2], index: 2, kind: output, shape index: {}]
  %s3 = sld [smem:[#allocation0]]
  $region26: #{tpu_custom_call.1} parent=0
    _
  %s5 = ssub.s32 1, %s3
  %s6 = scalar_select 0, %s5, %s3
  $region1: #{tpu_custom_call.1} parent=0
    #allocation2 [shape = 'u8[8192]{0}', space=vmem, size = 0x2000, scoped, tag = 'input window, operand 0, single buffered']
    #allocation3 [shape = 's32[1]{0}', space=sflag, size = 0x4, scoped, tag = 'scoped memory for tpu_custom_call.1']
    #allocation4 [shape = 'u8[131072]{0}', space=vmem, size = 0x20000, scoped, tag = 'input window, operand 1, single buffered']
    #allocation5 [shape = 's32[1]{0}', space=sflag, size = 0x4, scoped, tag = 'scoped memory for tpu_custom_call.1']
    %7 = vsyncpa [#allocation3], 0
    %8 = vsyncpa [#allocation5], 0
    // Predicated region
    $region2: #{tpu_custom_call.1} parent=1 // pred_check
      _
    $region3: #{tpu_custom_call.1} parent=1 // pred_check_branch
      %10 = sbr.rel (0) target = $region5
    $region4: #{tpu_custom_call.1} parent=1 // pred_region
      %12 = vsyncadd [#allocation3], 0
      %s14 = sshll.u32 %s0, 4
      %s15 = int_to_ptr.hbm [resolvable:$true] %s14
      %s16 = sshll.u32 [#allocation2], 4
      %s17 = int_to_ptr.vmem [resolvable:$true] %s16
      %19 = dma.hbm_to_vmem [thread:$0]  %s15, 256, %s17, [#allocation3]
    $region5: #{tpu_custom_call.1} parent=1 // pred_fallthru
      _
    // Predicated region
    $region6: #{tpu_custom_call.1} parent=1 // pred_check
      _
    $region7: #{tpu_custom_call.1} parent=1 // pred_check_branch
      %21 = sbr.rel (0) target = $region9
    $region8: #{tpu_custom_call.1} parent=1 // pred_region
      %23 = vsyncadd [#allocation5], 0
      %s24 = sshll.u32 %s1, 4
      %s25 = int_to_ptr.hbm [resolvable:$true] %s24
      %s26 = sshll.u32 [#allocation4], 4
      %s27 = int_to_ptr.vmem [resolvable:$true] %s26
      %32 = dma.hbm_to_vmem [thread:$0]  %s25, 4096, %s27, [#allocation5], 1024, 1024, 64
    $region9: #{tpu_custom_call.1} parent=1 // pred_fallthru
      _
    // Predicated region
    $region10: #{tpu_custom_call.1} parent=1 // pred_check
      _
    $region11: #{tpu_custom_call.1} parent=1 // pred_check_branch
      %34 = sbr.rel (0) target = $region13
    $region12: #{tpu_custom_call.1} parent=1 // pred_region
      %36 = dma.done [#allocation3], 256
    $region13: #{tpu_custom_call.1} parent=1 // pred_fallthru
      _
    // Predicated region
    $region14: #{tpu_custom_call.1} parent=1 // pred_check
      _
    $region15: #{tpu_custom_call.1} parent=1 // pred_check_branch
      %38 = sbr.rel (0) target = $region17
    $region16: #{tpu_custom_call.1} parent=1 // pred_region
      %40 = dma.done [#allocation5], 4096
    $region17: #{tpu_custom_call.1} parent=1 // pred_fallthru
      _
    %v41 = vld [vmem:[#allocation2] sm:$0xff]
    %v42 = vld [vmem:[#allocation2 + $0x8] sm:$0xff]
    %v43 = vld [vmem:[#allocation4] sm:$0xff]
    %v44 = vld [vmem:[#allocation4 + $0x8] sm:$0xff]
    %v45 = vld [vmem:[#allocation4 + $0x10] sm:$0xff]
    %v46 = vld [vmem:[#allocation4 + $0x18] sm:$0xff]
    %v47 = vld [vmem:[#allocation4 + $0x20] sm:$0xff]
    %v48 = vld [vmem:[#allocation4 + $0x28] sm:$0xff]
    %v49 = vld [vmem:[#allocation4 + $0x30] sm:$0xff]
    %v50 = vld [vmem:[#allocation4 + $0x38] sm:$0xff]
    %v51 = vld [vmem:[#allocation4 + $0x40] sm:$0xff]
    %v52 = vld [vmem:[#allocation4 + $0x48] sm:$0xff]
    %v53 = vld [vmem:[#allocation4 + $0x50] sm:$0xff]
    %v54 = vld [vmem:[#allocation4 + $0x58] sm:$0xff]
    %v55 = vld [vmem:[#allocation4 + $0x60] sm:$0xff]
    %v56 = vld [vmem:[#allocation4 + $0x68] sm:$0xff]
    %v57 = vld [vmem:[#allocation4 + $0x70] sm:$0xff]
    %v58 = vld [vmem:[#allocation4 + $0x78] sm:$0xff]
    %v59 = vld [vmem:[#allocation4 + $0x80] sm:$0xff]
    %v60 = vld [vmem:[#allocation4 + $0x88] sm:$0xff]
    %v61 = vld [vmem:[#allocation4 + $0x90] sm:$0xff]
    %v62 = vld [vmem:[#allocation4 + $0x98] sm:$0xff]
    %v63 = vld [vmem:[#allocation4 + $0xa0] sm:$0xff]
    %v64 = vld [vmem:[#allocation4 + $0xa8] sm:$0xff]
    %v65 = vld [vmem:[#allocation4 + $0xb0] sm:$0xff]
    %v66 = vld [vmem:[#allocation4 + $0xb8] sm:$0xff]
    %v67 = vld [vmem:[#allocation4 + $0xc0] sm:$0xff]
    %v68 = vld [vmem:[#allocation4 + $0xc8] sm:$0xff]
    %v69 = vld [vmem:[#allocation4 + $0xd0] sm:$0xff]
    %v70 = vld [vmem:[#allocation4 + $0xd8] sm:$0xff]
    %v71 = vld [vmem:[#allocation4 + $0xe0] sm:$0xff]
    %v72 = vld [vmem:[#allocation4 + $0xe8] sm:$0xff]
    %v73 = vld [vmem:[#allocation4 + $0xf0] sm:$0xff]
    %v74 = vld [vmem:[#allocation4 + $0xf8] sm:$0xff]
    %77 = vst [vmem:[#allocation1] ss:$4 sm:$0xff] %v41
    %s78 = scalar_lea.vmem [#allocation1], 32
    %79 = vst [vmem:[%s78] ss:$4 sm:$0xff] %v42
    %v80 = vld.sshfl [vmem:[#allocation1] sm:$0xff pattern:$0x73625140]
    %v81 = vld.sshfl [vmem:[#allocation1 + $0x8] sm:$0xff pattern:$0x73625140]
    %v82 = vld.sshfl [vmem:[#allocation1 + $0x10] sm:$0xff pattern:$0x73625140]
    %v83 = vld.sshfl [vmem:[#allocation1 + $0x18] sm:$0xff pattern:$0x73625140]
    %v84 = vld.sshfl [vmem:[#allocation1 + $0x20] sm:$0xff pattern:$0x73625140]
    %v85 = vld.sshfl [vmem:[#allocation1 + $0x28] sm:$0xff pattern:$0x73625140]
    %v86 = vld.sshfl [vmem:[#allocation1 + $0x30] sm:$0xff pattern:$0x73625140]
    %v87 = vld.sshfl [vmem:[#allocation1 + $0x38] sm:$0xff pattern:$0x73625140]
    %96 = vmatpush.xpose.msra.mxu0 0.0
    %97 = vmatpush.xpose.msra.mxu0 0.0
    %98 = vmatpush.xpose.msra.mxu0 0.0
    %99 = vmatpush.xpose.msra.mxu0 0.0
    %100 = vmatpush.xpose.msra.mxu0 0.0
    %101 = vmatpush.xpose.msra.mxu0 0.0
    %102 = vmatpush.xpose.msra.mxu0 0.0
    %103 = vmatpush.xpose.msra.mxu0 0.0
    %104 = vmatpush.xpose.msra.mxu0 0.0
    %105 = vmatpush.xpose.msra.mxu0 0.0
    %106 = vmatpush.xpose.msra.mxu0 0.0
    %107 = vmatpush.xpose.msra.mxu0 0.0
    %108 = vmatpush.xpose.msra.mxu0 0.0
    %109 = vmatpush.xpose.msra.mxu0 0.0
    %110 = vmatpush.xpose.msra.mxu0 0.0
    %111 = vmatpush.xpose.msra.mxu0 %v80
    %112 = vmatmul.f32.gmra.mxu0 %v43
    %v113 = vpop.f32.mrf.mxu0
    %v114 = vadd.f32 0.0, %v113
    %115 = vmatmul.f32.gmra.mxu0 %v51
    %v116 = vpop.f32.mrf.mxu0
    %v117 = vadd.f32 0.0, %v116
    %118 = vmatmul.f32.gmra.mxu0 %v59
    %v119 = vpop.f32.mrf.mxu0
    %v120 = vadd.f32 0.0, %v119
    %121 = vmatmul.f32.gmra.mxu0 %v67
    %v122 = vpop.f32.mrf.mxu0
    %v123 = vadd.f32 0.0, %v122
    %124 = vdwg.mxu0
    %125 = vmatpush.xpose.msra.mxu0 0.0
    %126 = vmatpush.xpose.msra.mxu0 0.0
    %127 = vmatpush.xpose.msra.mxu0 0.0
    %128 = vmatpush.xpose.msra.mxu0 0.0
    %129 = vmatpush.xpose.msra.mxu0 0.0
    %130 = vmatpush.xpose.msra.mxu0 0.0
    %131 = vmatpush.xpose.msra.mxu0 0.0
    %132 = vmatpush.xpose.msra.mxu0 0.0
    %133 = vmatpush.xpose.msra.mxu0 0.0
    %134 = vmatpush.xpose.msra.mxu0 0.0
    %135 = vmatpush.xpose.msra.mxu0 0.0
    %136 = vmatpush.xpose.msra.mxu0 0.0
    %137 = vmatpush.xpose.msra.mxu0 0.0
    %138 = vmatpush.xpose.msra.mxu0 0.0
    %139 = vmatpush.xpose.msra.mxu0 0.0
    %140 = vmatpush.xpose.msra.mxu0 %v81
    %141 = vmatmul.f32.gmra.mxu0 %v44
    %v142 = vpop.f32.mrf.mxu0
    %v143 = vadd.f32 %v114, %v142
    %144 = vmatmul.f32.gmra.mxu0 %v52
    %v145 = vpop.f32.mrf.mxu0
    %v146 = vadd.f32 %v117, %v145
    %147 = vmatmul.f32.gmra.mxu0 %v60
    %v148 = vpop.f32.mrf.mxu0
    %v149 = vadd.f32 %v120, %v148
    %150 = vmatmul.f32.gmra.mxu0 %v68
    %v151 = vpop.f32.mrf.mxu0
    %v152 = vadd.f32 %v123, %v151
    %153 = vdwg.mxu0
    %154 = vmatpush.xpose.msra.mxu0 0.0
    %155 = vmatpush.xpose.msra.mxu0 0.0
    %156 = vmatpush.xpose.msra.mxu0 0.0
    %157 = vmatpush.xpose.msra.mxu0 0.0
    %158 = vmatpush.xpose.msra.mxu0 0.0
    %159 = vmatpush.xpose.msra.mxu0 0.0
    %160 = vmatpush.xpose.msra.mxu0 0.0
    %161 = vmatpush.xpose.msra.mxu0 0.0
    %162 = vmatpush.xpose.msra.mxu0 0.0
    %163 = vmatpush.xpose.msra.mxu0 0.0
    %164 = vmatpush.xpose.msra.mxu0 0.0
    %165 = vmatpush.xpose.msra.mxu0 0.0
    %166 = vmatpush.xpose.msra.mxu0 0.0
    %167 = vmatpush.xpose.msra.mxu0 0.0
    %168 = vmatpush.xpose.msra.mxu0 0.0
    %169 = vmatpush.xpose.msra.mxu0 %v82
    %170 = vmatmul.f32.gmra.mxu0 %v45
    %v171 = vpop.f32.mrf.mxu0
    %v172 = vadd.f32 %v143, %v171
    %173 = vmatmul.f32.gmra.mxu0 %v53
    %v174 = vpop.f32.mrf.mxu0
    %v175 = vadd.f32 %v146, %v174
    %176 = vmatmul.f32.gmra.mxu0 %v61
    %v177 = vpop.f32.mrf.mxu0
    %v178 = vadd.f32 %v149, %v177
    %179 = vmatmul.f32.gmra.mxu0 %v69
    %v180 = vpop.f32.mrf.mxu0
    %v181 = vadd.f32 %v152, %v180
    %182 = vdwg.mxu0
    %183 = vmatpush.xpose.msra.mxu0 0.0
    %184 = vmatpush.xpose.msra.mxu0 0.0
    %185 = vmatpush.xpose.msra.mxu0 0.0
    %186 = vmatpush.xpose.msra.mxu0 0.0
    %187 = vmatpush.xpose.msra.mxu0 0.0
    %188 = vmatpush.xpose.msra.mxu0 0.0
    %189 = vmatpush.xpose.msra.mxu0 0.0
    %190 = vmatpush.xpose.msra.mxu0 0.0
    %191 = vmatpush.xpose.msra.mxu0 0.0
    %192 = vmatpush.xpose.msra.mxu0 0.0
    %193 = vmatpush.xpose.msra.mxu0 0.0
    %194 = vmatpush.xpose.msra.mxu0 0.0
    %195 = vmatpush.xpose.msra.mxu0 0.0
    %196 = vmatpush.xpose.msra.mxu0 0.0
    %197 = vmatpush.xpose.msra.mxu0 0.0
    %198 = vmatpush.xpose.msra.mxu0 %v83
    %199 = vmatmul.f32.gmra.mxu0 %v46
    %v200 = vpop.f32.mrf.mxu0
    %v201 = vadd.f32 %v172, %v200
    %202 = vmatmul.f32.gmra.mxu0 %v54
    %v203 = vpop.f32.mrf.mxu0
    %v204 = vadd.f32 %v175, %v203
    %205 = vmatmul.f32.gmra.mxu0 %v62
    %v206 = vpop.f32.mrf.mxu0
    %v207 = vadd.f32 %v178, %v206
    %208 = vmatmul.f32.gmra.mxu0 %v70
    %v209 = vpop.f32.mrf.mxu0
    %v210 = vadd.f32 %v181, %v209
    %211 = vdwg.mxu0
    %212 = vmatpush.xpose.msra.mxu0 0.0
    %213 = vmatpush.xpose.msra.mxu0 0.0
    %214 = vmatpush.xpose.msra.mxu0 0.0
    %215 = vmatpush.xpose.msra.mxu0 0.0
    %216 = vmatpush.xpose.msra.mxu0 0.0
    %217 = vmatpush.xpose.msra.mxu0 0.0
    %218 = vmatpush.xpose.msra.mxu0 0.0
    %219 = vmatpush.xpose.msra.mxu0 0.0
    %220 = vmatpush.xpose.msra.mxu0 0.0
    %221 = vmatpush.xpose.msra.mxu0 0.0
    %222 = vmatpush.xpose.msra.mxu0 0.0
    %223 = vmatpush.xpose.msra.mxu0 0.0
    %224 = vmatpush.xpose.msra.mxu0 0.0
    %225 = vmatpush.xpose.msra.mxu0 0.0
    %226 = vmatpush.xpose.msra.mxu0 0.0
    %227 = vmatpush.xpose.msra.mxu0 %v84
    %228 = vmatmul.f32.gmra.mxu0 %v47
    %v229 = vpop.f32.mrf.mxu0
    %v230 = vadd.f32 %v201, %v229
    %231 = vmatmul.f32.gmra.mxu0 %v55
    %v232 = vpop.f32.mrf.mxu0
    %v233 = vadd.f32 %v204, %v232
    %234 = vmatmul.f32.gmra.mxu0 %v63
    %v235 = vpop.f32.mrf.mxu0
    %v236 = vadd.f32 %v207, %v235
    %237 = vmatmul.f32.gmra.mxu0 %v71
    %v238 = vpop.f32.mrf.mxu0
    %v239 = vadd.f32 %v210, %v238
    %240 = vdwg.mxu0
    %241 = vmatpush.xpose.msra.mxu0 0.0
    %242 = vmatpush.xpose.msra.mxu0 0.0
    %243 = vmatpush.xpose.msra.mxu0 0.0
    %244 = vmatpush.xpose.msra.mxu0 0.0
    %245 = vmatpush.xpose.msra.mxu0 0.0
    %246 = vmatpush.xpose.msra.mxu0 0.0
    %247 = vmatpush.xpose.msra.mxu0 0.0
    %248 = vmatpush.xpose.msra.mxu0 0.0
    %249 = vmatpush.xpose.msra.mxu0 0.0
    %250 = vmatpush.xpose.msra.mxu0 0.0
    %251 = vmatpush.xpose.msra.mxu0 0.0
    %252 = vmatpush.xpose.msra.mxu0 0.0
    %253 = vmatpush.xpose.msra.mxu0 0.0
    %254 = vmatpush.xpose.msra.mxu0 0.0
    %255 = vmatpush.xpose.msra.mxu0 0.0
    %256 = vmatpush.xpose.msra.mxu0 %v85
    %257 = vmatmul.f32.gmra.mxu0 %v48
    %v258 = vpop.f32.mrf.mxu0
    %v259 = vadd.f32 %v230, %v258
    %260 = vmatmul.f32.gmra.mxu0 %v56
    %v261 = vpop.f32.mrf.mxu0
    %v262 = vadd.f32 %v233, %v261
    %263 = vmatmul.f32.gmra.mxu0 %v64
    %v264 = vpop.f32.mrf.mxu0
    %v265 = vadd.f32 %v236, %v264
    %266 = vmatmul.f32.gmra.mxu0 %v72
    %v267 = vpop.f32.mrf.mxu0
    %v268 = vadd.f32 %v239, %v267
    %269 = vdwg.mxu0
    %270 = vmatpush.xpose.msra.mxu0 0.0
    %271 = vmatpush.xpose.msra.mxu0 0.0
    %272 = vmatpush.xpose.msra.mxu0 0.0
    %273 = vmatpush.xpose.msra.mxu0 0.0
    %274 = vmatpush.xpose.msra.mxu0 0.0
    %275 = vmatpush.xpose.msra.mxu0 0.0
    %276 = vmatpush.xpose.msra.mxu0 0.0
    %277 = vmatpush.xpose.msra.mxu0 0.0
    %278 = vmatpush.xpose.msra.mxu0 0.0
    %279 = vmatpush.xpose.msra.mxu0 0.0
    %280 = vmatpush.xpose.msra.mxu0 0.0
    %281 = vmatpush.xpose.msra.mxu0 0.0
    %282 = vmatpush.xpose.msra.mxu0 0.0
    %283 = vmatpush.xpose.msra.mxu0 0.0
    %284 = vmatpush.xpose.msra.mxu0 0.0
    %285 = vmatpush.xpose.msra.mxu0 %v86
    %286 = vmatmul.f32.gmra.mxu0 %v49
    %v287 = vpop.f32.mrf.mxu0
    %v288 = vadd.f32 %v259, %v287
    %289 = vmatmul.f32.gmra.mxu0 %v57
    %v290 = vpop.f32.mrf.mxu0
    %v291 = vadd.f32 %v262, %v290
    %292 = vmatmul.f32.gmra.mxu0 %v65
    %v293 = vpop.f32.mrf.mxu0
    %v294 = vadd.f32 %v265, %v293
    %295 = vmatmul.f32.gmra.mxu0 %v73
    %v296 = vpop.f32.mrf.mxu0
    %v297 = vadd.f32 %v268, %v296
    %298 = vdwg.mxu0
    %299 = vmatpush.xpose.msra.mxu0 0.0
    %300 = vmatpush.xpose.msra.mxu0 0.0
    %301 = vmatpush.xpose.msra.mxu0 0.0
    %302 = vmatpush.xpose.msra.mxu0 0.0
    %303 = vmatpush.xpose.msra.mxu0 0.0
    %304 = vmatpush.xpose.msra.mxu0 0.0
    %305 = vmatpush.xpose.msra.mxu0 0.0
    %306 = vmatpush.xpose.msra.mxu0 0.0
    %307 = vmatpush.xpose.msra.mxu0 0.0
    %308 = vmatpush.xpose.msra.mxu0 0.0
    %309 = vmatpush.xpose.msra.mxu0 0.0
    %310 = vmatpush.xpose.msra.mxu0 0.0
    %311 = vmatpush.xpose.msra.mxu0 0.0
    %312 = vmatpush.xpose.msra.mxu0 0.0
    %313 = vmatpush.xpose.msra.mxu0 0.0
    %314 = vmatpush.xpose.msra.mxu0 %v87
    %315 = vmatmul.f32.gmra.mxu0 %v50
    %v316 = vpop.f32.mrf.mxu0
    %v317 = vadd.f32 %v288, %v316
    %318 = vmatmul.f32.gmra.mxu0 %v58
    %v319 = vpop.f32.mrf.mxu0
    %v320 = vadd.f32 %v291, %v319
    %321 = vmatmul.f32.gmra.mxu0 %v66
    %v322 = vpop.f32.mrf.mxu0
    %v323 = vadd.f32 %v294, %v322
    %324 = vmatmul.f32.gmra.mxu0 %v74
    %v325 = vpop.f32.mrf.mxu0
    %v326 = vadd.f32 %v297, %v325
    %327 = vdwg.mxu0
    %vm328 = vcmask 15360
    %329 = vst.msk [vmem:[%s2] sm:$0xff] %vm328, %v317
    %330 = vst.msk [vmem:[%s2 + $0x8] sm:$0xff] %vm328, %v320
    %331 = vst.msk [vmem:[%s2 + $0x10] sm:$0xff] %vm328, %v323
    %332 = vst.msk [vmem:[%s2 + $0x18] sm:$0xff] %vm328, %v326
    // Predicated region
    $region18: #{tpu_custom_call.1} parent=1 // pred_check
      _
    $region19: #{tpu_custom_call.1} parent=1 // pred_check_branch
      %334 = sbr.rel (0) target = $region21
    $region20: #{tpu_custom_call.1} parent=1 // pred_region
      _
    $region21: #{tpu_custom_call.1} parent=1 // pred_fallthru
      _
    // Predicated region
    $region22: #{tpu_custom_call.1} parent=1 // pred_check
      _
    $region23: #{tpu_custom_call.1} parent=1 // pred_check_branch
      %336 = sbr.rel (0) target = $region25
    $region24: #{tpu_custom_call.1} parent=1 // pred_region
      _
    $region25: #{tpu_custom_call.1} parent=1 // pred_fallthru
      _
    %337 = vsyncpa [#allocation3], 1
    %338 = vsyncpa [#allocation5], 1

</llo_original>
